<compile_context>
chip_gen: v7x
topology: tpu7x:2x2x1
jax: 0.10.0
libtpu: 0.0.40
codegen_flags: <defaults>
</compile_context>

<pallas_src>
import functools

import jax
import jax.numpy as jnp
from jax.experimental import pallas as pl
from jax.experimental.pallas import tpu as pltpu

_MiB = 1024 * 1024


def _round_up(x: int, m: int) -> int:
    return ((x + m - 1) // m) * m


@functools.lru_cache(maxsize=1)
def _vmem_budget_bytes() -> int:
    """Per-kernel VMEM budget: ~75% of physical VMEM, capped at 96 MiB.

    v5e/v6e (128 MiB physical) -> 96 MiB; v7x (64 MiB physical) -> 48 MiB.
    """
    cap = 128 * _MiB
    try:
        info = pltpu.get_tpu_info()
        cap = int(getattr(info, "vmem_capacity_bytes", cap)) or cap
    except Exception:
        pass
    return min((cap * 3) // 4, 96 * _MiB)


def _choose_tiles(M, K, N, x_dtype, w_dtype, o_dtype, tm, tn, tk, budget):
    ix = jnp.dtype(x_dtype).itemsize
    iw = jnp.dtype(w_dtype).itemsize
    io = jnp.dtype(o_dtype).itemsize
    sub = 8 * max(1, 4 // ix)  # sublane multiple for x / output rows

    tm = 512 if tm is None else tm
    tn = 512 if tn is None else tn

    tm = max(sub, min(_round_up(tm, sub), _round_up(M, sub)))
    tn = max(128, min(_round_up(tn, 128), _round_up(N, 128)))

    # Skewed/decode shapes: with a single M block, keep >= 2 N blocks so the
    # "parallel" N axis can shard across v7x's 2 TensorCores (no-op elsewhere).
    if -(-M // tm) == 1 and -(-N // tn) == 1 and N > 128:
        tn = max(128, _round_up(_round_up(N, 128) // 2, 128))

    # Keep the resident f32 accumulator + double-buffered output tile well
    # inside the budget before sizing tk.
    while tm * tn * (4 + 2 * io) > budget // 2 and tn > 128:
        tn = max(128, _round_up(tn // 2, 128))
    while tm * tn * (4 + 2 * io) > budget // 2 and tm > sub:
        tm = max(sub, _round_up(tm // 2, sub))

    # Budget the K tile: double-buffered x (tm,tk) and w (tk,tn) blocks must
    # fit next to the accumulator / output / bias buffers (+2 MiB margin).
    fixed = tm * tn * 4 + 2 * tm * tn * io + 2 * tn * iw + 2 * _MiB
    per_k = 2 * (tm * ix + tn * iw)
    tk_budget = max(128, (budget - fixed) // per_k)

    if tk is None:
        tk = K if K <= 2048 else 1024
    tk = min(tk, tk_budget)

    if tk >= K:
        tk, Kp = K, K  # full-K tile: single K step, no K padding needed
    else:
        tk = max(128, (tk // 128) * 128)
        Kp = _round_up(K, tk)  # zero-pad K so the contraction stays exact

    return tm, tn, tk, Kp


def _make_kernel(has_bias: bool, multi_k: bool, precision):
    def mm(x_ref, w_ref):
        return jnp.dot(
            x_ref[...],
            w_ref[...],
            preferred_element_type=jnp.float32,
            precision=precision,
        )

    if multi_k and has_bias:

        def kernel(x_ref, w_ref, b_ref, o_ref, acc_ref):
            @pl.when(pl.program_id(2) == 0)
            def _():
                acc_ref[...] = jnp.zeros_like(acc_ref)

            acc_ref[...] += mm(x_ref, w_ref)

            @pl.when(pl.program_id(2) == pl.num_programs(2) - 1)
            def _():
                acc = acc_ref[...] + b_ref[...].astype(jnp.float32)
                o_ref[...] = acc.astype(o_ref.dtype)

    elif multi_k:

        def kernel(x_ref, w_ref, o_ref, acc_ref):
            @pl.when(pl.program_id(2) == 0)
            def _():
                acc_ref[...] = jnp.zeros_like(acc_ref)

            acc_ref[...] += mm(x_ref, w_ref)

            @pl.when(pl.program_id(2) == pl.num_programs(2) - 1)
            def _():
                o_ref[...] = acc_ref[...].astype(o_ref.dtype)

    elif has_bias:

        def kernel(x_ref, w_ref, b_ref, o_ref):
            acc = mm(x_ref, w_ref) + b_ref[...].astype(jnp.float32)
            o_ref[...] = acc.astype(o_ref.dtype)

    else:

        def kernel(x_ref, w_ref, o_ref):
            o_ref[...] = mm(x_ref, w_ref).astype(o_ref.dtype)

    return kernel


@functools.partial(jax.jit, static_argnames=("tm", "tn", "tk", "precision"))
def dense(x, weight, bias=None, *, tm=None, tn=None, tk=None, precision=None):
    """y = x @ weight (+ bias), matching PyTorch Dense.forward semantics."""
    K, N = weight.shape
    orig_shape = x.shape
    assert orig_shape[-1] == K, "last dim of x must equal input_dim"
    x2d = x.reshape(-1, K)
    M = x2d.shape[0]

    budget = _vmem_budget_bytes()
    tm, tn, tk, Kp = _choose_tiles(
        M, K, N, x.dtype, weight.dtype, x.dtype, tm, tn, tk, budget
    )

    # Zero-pad along K only (needed for a correct contraction when K is
    # tiled).  M/N tails are handled by Pallas partial blocks: out-of-bounds
    # input garbage only reaches out-of-bounds output rows/cols, which are
    # never written back.
    if Kp != K:
        x2d = jnp.pad(x2d, ((0, 0), (0, Kp - K)))
        weight = jnp.pad(weight, ((0, Kp - K), (0, 0)))

    m_blocks = pl.cdiv(M, tm)
    n_blocks = pl.cdiv(N, tn)
    k_blocks = Kp // tk
    multi_k = k_blocks > 1
    has_bias = bias is not None

    ix = jnp.dtype(x.dtype).itemsize
    iw = jnp.dtype(weight.dtype).itemsize
    cost = pl.CostEstimate(
        flops=2 * M * K * N,
        transcendentals=0,
        bytes_accessed=(
            M * Kp * ix * n_blocks      # x is re-streamed once per N block
            + Kp * N * iw * m_blocks    # w is re-streamed once per M block
            + M * N * ix                # output written once
            + (N * iw if has_bias else 0)
        ),
    )

    if multi_k:
        grid = (m_blocks, n_blocks, k_blocks)
        semantics = ("parallel", "parallel", "arbitrary")
        x_spec = pl.BlockSpec((tm, tk), lambda i, j, k: (i, k))
        w_spec = pl.BlockSpec((tk, tn), lambda i, j, k: (k, j))
        o_spec = pl.BlockSpec((tm, tn), lambda i, j, k: (i, j))
        b_spec = pl.BlockSpec((1, tn), lambda i, j, k: (0, j))
        scratch = [pltpu.VMEM((tm, tn), jnp.float32)]
    else:
        grid = (m_blocks, n_blocks)
        semantics = ("parallel", "parallel")
        x_spec = pl.BlockSpec((tm, tk), lambda i, j: (i, 0))
        w_spec = pl.BlockSpec((tk, tn), lambda i, j: (0, j))
        o_spec = pl.BlockSpec((tm, tn), lambda i, j: (i, j))
        b_spec = pl.BlockSpec((1, tn), lambda i, j: (0, j))
        scratch = []

    cparams = pltpu.CompilerParams(
        dimension_semantics=semantics,
        vmem_limit_bytes=budget,
    )

    operands = [x2d, weight]
    in_specs = [x_spec, w_spec]
    if has_bias:
        operands.append(bias.reshape(1, N))
        in_specs.append(b_spec)

    kernel = _make_kernel(has_bias, multi_k, precision)

    out = pl.pallas_call(
        kernel,
        out_shape=jax.ShapeDtypeStruct((M, N), x.dtype),
        grid_spec=pltpu.PrefetchScalarGridSpec(
            num_scalar_prefetch=0,
            grid=grid,
            in_specs=in_specs,
            out_specs=o_spec,
            scratch_shapes=scratch,
        ),
        compiler_params=cparams,
        cost_estimate=cost,
    )(*operands)

    return out.reshape(*orig_shape[:-1], N)


if __name__ == "__main__":
    # Deterministic parameters / inputs (torch.randn-like weight, zeros bias).
    input_dim, output_dim = 32, 64
    batch, seq = 2, 8

    key = jax.random.PRNGKey(0)
    kx, kw, kx2, kx3, kw3 = jax.random.split(key, 5)
    x = jax.random.normal(kx, (batch, seq, input_dim), dtype=jnp.float32)
    weight = jax.random.normal(kw, (input_dim, output_dim), dtype=jnp.float32)
    bias = jnp.zeros((output_dim,), dtype=jnp.float32)

    # 1) Bias path, single-K tile (no accumulator).
    y = dense(x, weight, bias)
    jax.block_until_ready(y)
    y_ref = x @ weight + bias
    assert y.shape == (batch, seq, output_dim)
    assert jnp.allclose(y, y_ref, atol=1e-4, rtol=1e-4)

    # 2) No-bias path + non-tile-aligned leading shape (partial M/N blocks,
    #    no materialized padding).
    x_odd = jax.random.normal(kx2, (3, 5, input_dim), dtype=jnp.float32)
    y2 = dense(x_odd, weight, None)
    jax.block_until_ready(y2)
    y2_ref = x_odd @ weight
    assert y2.shape == (3, 5, output_dim)
    assert jnp.allclose(y2, y2_ref, atol=1e-4, rtol=1e-4)

    # 3) Large, non-aligned K (exercises K zero-padding + the multi-K
    #    accumulator grid).  Loose tolerance: the kernel and the XLA reference
    #    may use different f32-on-MXU pass counts / accumulation orders.
    K3, N3 = 2100, 256
    x3 = jax.random.normal(kx3, (2, 4, K3), dtype=jnp.float32)
    w3 = jax.random.normal(kw3, (K3, N3), dtype=jnp.float32)
    b3 = jax.random.normal(key, (N3,), dtype=jnp.float32)
    y3 = dense(x3, w3, b3)
    jax.block_until_ready(y3)
    y3_ref = x3 @ w3 + b3
    assert y3.shape == (2, 4, N3)
    assert jnp.allclose(y3, y3_ref, atol=2e-1, rtol=2e-2)

    print("KERNEL_OK")
</pallas_src>

<mosaic_0001>
module attributes {stable_mosaic.version = 11 : i64} {
  func.func @kernel(%arg0: i32, %arg1: i32, %arg2: memref<16x32xf32, #tpu.memory_space<vmem>>, %arg3: memref<32x128xf32, #tpu.memory_space<vmem>>, %arg4: memref<1x128xf32, #tpu.memory_space<vmem>>, %arg5: memref<16x128xf32, #tpu.memory_space<vmem>>) attributes {dimension_semantics = [#tpu.dimension_semantics<parallel>, #tpu.dimension_semantics<parallel>], iteration_bounds = array<i64: 1, 1>, scalar_prefetch = 0 : i64, scratch_operands = 0 : i64, tpu.core_type = #tpu.core_type<tc>, window_params = [{transform_indices = @transform_0, window_bounds = array<i64: 16, 32>}, {transform_indices = @transform_1, window_bounds = array<i64: 32, 128>}, {transform_indices = @transform_2, window_bounds = array<i64: 1, 128>}, {transform_indices = @transform_3, window_bounds = array<i64: 16, 128>}]} {
    %c0 = arith.constant 0 : index
    %c0_0 = arith.constant 0 : index
    %0 = vector.load %arg2[%c0, %c0_0] : memref<16x32xf32, #tpu.memory_space<vmem>>, vector<16x32xf32>
    %c0_1 = arith.constant 0 : index
    %c0_2 = arith.constant 0 : index
    %1 = vector.load %arg3[%c0_1, %c0_2] : memref<32x128xf32, #tpu.memory_space<vmem>>, vector<32x128xf32>
    %cst = arith.constant dense<0.000000e+00> : vector<16x128xf32>
    %2 = tpu.matmul %0, %1, %cst {dimension_numbers = #tpu.dot_dimension_numbers<[1], [0], [0], [1], [0, 0, 1, 1], [], []>} : vector<16x32xf32>, vector<32x128xf32>, vector<16x128xf32> -> vector<16x128xf32>
    %c0_3 = arith.constant 0 : index
    %c0_4 = arith.constant 0 : index
    %3 = vector.load %arg4[%c0_3, %c0_4] : memref<1x128xf32, #tpu.memory_space<vmem>>, vector<1x128xf32>
    %4 = vector.broadcast %3 : vector<1x128xf32> to vector<16x128xf32>
    %5 = arith.addf %2, %4 : vector<16x128xf32>
    %c0_5 = arith.constant 0 : index
    %c0_6 = arith.constant 0 : index
    %6 = vector.load %arg5[%c0_5, %c0_6] : memref<16x128xf32, #tpu.memory_space<vmem>>, vector<16x128xf32>
    tpu.vector_store %arg5[%c0_5, %c0_6], %5 {strides = array<i32>} : memref<16x128xf32, #tpu.memory_space<vmem>>, vector<16x128xf32>,
    return
  }
  func.func @transform_0(%arg0: i32, %arg1: i32) -> (i32, i32) {
    %c0_i32 = arith.constant 0 : i32
    %c0_i32_0 = arith.constant 0 : i32
    return %arg0, %c0_i32 : i32, i32
  }
  func.func @transform_1(%arg0: i32, %arg1: i32) -> (i32, i32) {
    %c0_i32 = arith.constant 0 : i32
    %c0_i32_0 = arith.constant 0 : i32
    return %c0_i32, %arg1 : i32, i32
  }
  func.func @transform_2(%arg0: i32, %arg1: i32) -> (i32, i32) {
    %c0_i32 = arith.constant 0 : i32
    %c0_i32_0 = arith.constant 0 : i32
    return %c0_i32, %arg1 : i32, i32
  }
  func.func @transform_3(%arg0: i32, %arg1: i32) -> (i32, i32) {
    %c0_i32 = arith.constant 0 : i32
    return %arg0, %arg1 : i32, i32
  }
}

</mosaic_0001>

<llo_original>
// kernel: dense.1
$region0: #{dense.1}
  #allocation0 [shape = 'u32[]', space=smem, size = 0x4, offset = 0x4, fixed_abs, tag = 'smem constant byte address 0x4 - core index']
  #allocation1 [shape = 'u32[144,128]{1,0:T(1,128)}', space=vmem, size = 0x12000, scoped, tag = 'internal scratch']
  %s0 = inlined_call_operand.hbm [shape: f32[16,32], index: 0, kind: input, shape index: {}]
  %s1 = inlined_call_operand.hbm [shape: f32[32,64], index: 1, kind: input, shape index: {}]
  %s2 = inlined_call_operand.hbm [shape: f32[1,64], index: 2, kind: input, shape index: {}]
  %s3 = inlined_call_operand.hbm [shape: f32[16,64], index: 3, kind: output, shape index: {}]
  %s4 = sld [smem:[#allocation0]]
  $region34: #{dense.1} parent=0
    _
  %s6 = ssub.s32 1, %s4
  %s7 = scalar_select 0, %s6, %s4
  $region1: #{dense.1} parent=0
    #allocation2 [shape = 'u8[8192]{0}', space=vmem, size = 0x2000, scoped, tag = 'input window, operand 0, single buffered']
    #allocation3 [shape = 's32[1]{0}', space=sflag, size = 0x4, scoped, tag = 'scoped memory for dense.1']
    #allocation4 [shape = 's32[1]{0}', space=sflag, size = 0x4, scoped, tag = 'scoped memory for dense.1']
    #allocation5 [shape = 'u8[16384]{0}', space=vmem, size = 0x4000, scoped, tag = 'input window, operand 1, single buffered']
    #allocation6 [shape = 's32[1]{0}', space=sflag, size = 0x4, scoped, tag = 'scoped memory for dense.1']
    #allocation7 [shape = 'u8[512]{0}', space=vmem, size = 0x400, scoped, tag = 'input window, operand 2, single buffered']
    #allocation8 [shape = 'u8[8192]{0}', space=vmem, size = 0x2000, scoped, tag = 'output window, operand 0, single buffered']
    %8 = vsyncpa [#allocation3], 0
    %9 = vsyncpa [#allocation6], 0
    %10 = vsyncpa [#allocation4], 0
    // Predicated region
    $region2: #{dense.1} parent=1 // pred_check
      _
    $region3: #{dense.1} parent=1 // pred_check_branch
      %12 = sbr.rel (0) target = $region5
    $region4: #{dense.1} parent=1 // pred_region
      %s14 = ssub.s32 256, 256
      %15 = vsyncadd [#allocation3], %s14
      %s16 = sshll.u32 [#allocation2], 4
      %s17 = int_to_ptr.vmem [resolvable:$true] %s16
      %22 = dma.hbm_to_vmem [thread:$0]  %s0, 256, %s17, [#allocation3], 128, 128, 8
    $region5: #{dense.1} parent=1 // pred_fallthru
      _
    // Predicated region
    $region6: #{dense.1} parent=1 // pred_check
      _
    $region7: #{dense.1} parent=1 // pred_check_branch
      %24 = sbr.rel (0) target = $region9
    $region8: #{dense.1} parent=1 // pred_region
      %s26 = ssub.s32 512, 512
      %27 = vsyncadd [#allocation6], %s26
      %s28 = sshll.u32 [#allocation5], 4
      %s29 = int_to_ptr.vmem [resolvable:$true] %s28
      %34 = dma.hbm_to_vmem [thread:$0]  %s1, 512, %s29, [#allocation6], 128, 128, 8
    $region9: #{dense.1} parent=1 // pred_fallthru
      _
    // Predicated region
    $region10: #{dense.1} parent=1 // pred_check
      _
    $region11: #{dense.1} parent=1 // pred_check_branch
      %36 = sbr.rel (0) target = $region13
    $region12: #{dense.1} parent=1 // pred_region
      %s38 = ssub.s32 16, 16
      %39 = vsyncadd [#allocation6], %s38
      %s41 = sshll.u32 [#allocation7], 4
      %s42 = int_to_ptr.vmem [resolvable:$true] %s41
      %44 = dma.hbm_to_vmem [thread:$0]  %s2, 16, %s42, [#allocation6]
    $region13: #{dense.1} parent=1 // pred_fallthru
      _
    // Predicated region
    $region14: #{dense.1} parent=1 // pred_check
      _
    $region15: #{dense.1} parent=1 // pred_check_branch
      %46 = sbr.rel (0) target = $region17
    $region16: #{dense.1} parent=1 // pred_region
      %47 = dma.done [#allocation3], 256
    $region17: #{dense.1} parent=1 // pred_fallthru
      _
    // Predicated region
    $region18: #{dense.1} parent=1 // pred_check
      _
    $region19: #{dense.1} parent=1 // pred_check_branch
      %49 = sbr.rel (0) target = $region21
    $region20: #{dense.1} parent=1 // pred_region
      %50 = dma.done [#allocation6], 512
    $region21: #{dense.1} parent=1 // pred_fallthru
      _
    // Predicated region
    $region22: #{dense.1} parent=1 // pred_check
      _
    $region23: #{dense.1} parent=1 // pred_check_branch
      %52 = sbr.rel (0) target = $region25
    $region24: #{dense.1} parent=1 // pred_region
      %53 = dma.done [#allocation6], 16
    $region25: #{dense.1} parent=1 // pred_fallthru
      _
    %v54 = vld [vmem:[#allocation2] sm:$0xff]
    %v55 = vld [vmem:[#allocation2 + $0x8] sm:$0xff]
    %v56 = vld [vmem:[#allocation5] sm:$0xff]
    %v57 = vld [vmem:[#allocation5 + $0x8] sm:$0xff]
    %v58 = vld [vmem:[#allocation5 + $0x10] sm:$0xff]
    %v59 = vld [vmem:[#allocation5 + $0x18] sm:$0xff]
    %v60 = vld [vmem:[#allocation7] sm:$0x1]
    %v62 = vlaneseq
    %v63 = vshrl.u32 %v62, 7
    %v64 = vsub.s32 0, %v63
    %v65 = vrot.slane %v60, %v64
    %vm67 = vcmask 261120
    %v69 = vsel %vm67, %v54, 0
    %v72 = vsel %vm67, %v55, 0
    %74 = vmatprep.subr.mxu0 0.0
    %75 = vmatpush1.msra.mxu0 %v56
    %76 = vmatprep.subr.mxu0 0.0
    %77 = vmatpush1.msra.mxu0 %v57
    %78 = vmatprep.subr.mxu0 0.0
    %79 = vmatpush1.msra.mxu0 %v58
    %80 = vmatprep.subr.mxu0 0.0
    %81 = vmatpush1.msra.mxu0 %v59
    %82 = vmatprep.subr.mxu0 0.0
    %83 = vmatpush1.msra.mxu0 0.0
    %84 = vmatprep.subr.mxu0 0.0
    %85 = vmatpush1.msra.mxu0 0.0
    %86 = vmatprep.subr.mxu0 0.0
    %87 = vmatpush1.msra.mxu0 0.0
    %88 = vmatprep.subr.mxu0 0.0
    %89 = vmatpush1.msra.mxu0 0.0
    %90 = vmatprep.subr.mxu0 0.0
    %91 = vmatpush1.msra.mxu0 0.0
    %92 = vmatprep.subr.mxu0 0.0
    %93 = vmatpush1.msra.mxu0 0.0
    %94 = vmatprep.subr.mxu0 0.0
    %95 = vmatpush1.msra.mxu0 0.0
    %96 = vmatprep.subr.mxu0 0.0
    %97 = vmatpush1.msra.mxu0 0.0
    %98 = vmatprep.subr.mxu0 0.0
    %99 = vmatpush1.msra.mxu0 0.0
    %100 = vmatprep.subr.mxu0 0.0
    %101 = vmatpush1.msra.mxu0 0.0
    %102 = vmatprep.subr.mxu0 0.0
    %103 = vmatpush1.msra.mxu0 0.0
    %104 = vmatprep.subr.mxu0 0.0
    %105 = vmatpush1.msra.mxu0 0.0
    %106 = vmatprep.subr.mxu0 0.0
    %107 = vmatpush1.msra.mxu0 0.0
    %108 = vmatprep.subr.mxu0 0.0
    %109 = vmatpush1.msra.mxu0 0.0
    %110 = vmatprep.subr.mxu0 0.0
    %111 = vmatpush1.msra.mxu0 0.0
    %112 = vmatprep.subr.mxu0 0.0
    %113 = vmatpush1.msra.mxu0 0.0
    %114 = vmatprep.subr.mxu0 0.0
    %115 = vmatpush1.msra.mxu0 0.0
    %116 = vmatprep.subr.mxu0 0.0
    %117 = vmatpush1.msra.mxu0 0.0
    %118 = vmatprep.subr.mxu0 0.0
    %119 = vmatpush1.msra.mxu0 0.0
    %120 = vmatprep.subr.mxu0 0.0
    %121 = vmatpush1.msra.mxu0 0.0
    %122 = vmatprep.subr.mxu0 0.0
    %123 = vmatpush1.msra.mxu0 0.0
    %124 = vmatprep.subr.mxu0 0.0
    %125 = vmatpush1.msra.mxu0 0.0
    %126 = vmatprep.subr.mxu0 0.0
    %127 = vmatpush1.msra.mxu0 0.0
    %128 = vmatprep.subr.mxu0 0.0
    %129 = vmatpush1.msra.mxu0 0.0
    %130 = vmatprep.subr.mxu0 0.0
    %131 = vmatpush1.msra.mxu0 0.0
    %132 = vmatprep.subr.mxu0 0.0
    %133 = vmatpush1.msra.mxu0 0.0
    %134 = vmatprep.subr.mxu0 0.0
    %135 = vmatpush1.msra.mxu0 0.0
    %136 = vmatprep.subr.mxu0 0.0
    %137 = vmatpush1.msra.mxu0 0.0
    %138 = vmatprep.mubr.f32.mxu0 0.0
    %139 = vmatmul.mubr.f32.gmra.mrb[0].mxu0 %v69
    %v140 = vpop.f32.mrb[0].mxu0
    %v141 = vadd.f32 %v65, %v140
    %v142 = vpop.f32.mrb[0].mxu0
    %143 = vmatprep.mubr.f32.mxu0 0.0
    %144 = vmatmul.mubr.f32.gmra.mrb[0].mxu0 %v72
    %v145 = vpop.f32.mrb[0].mxu0
    %v146 = vadd.f32 %v65, %v145
    %v147 = vpop.f32.mrb[0].mxu0
    %148 = vdwg.mxu0
    %149 = vst [vmem:[#allocation8] sm:$0xff] %v141
    %150 = vst [vmem:[#allocation8 + $0x8] sm:$0xff] %v146
    // Predicated region
    $region26: #{dense.1} parent=1 // pred_check
      _
    $region27: #{dense.1} parent=1 // pred_check_branch
      %152 = sbr.rel (0) target = $region29
    $region28: #{dense.1} parent=1 // pred_region
      %s154 = ssub.s32 256, 256
      %155 = vsyncadd [#allocation4], %s154
      %s156 = sshll.u32 [#allocation8], 4
      %s157 = int_to_ptr.vmem [resolvable:$true] %s156
      %162 = dma.vmem_to_hbm [thread:$0]  %s157, 256, %s3, [#allocation4], 128, 128, 8
    $region29: #{dense.1} parent=1 // pred_fallthru
      _
    // Predicated region
    $region30: #{dense.1} parent=1 // pred_check
      _
    $region31: #{dense.1} parent=1 // pred_check_branch
      %164 = sbr.rel (0) target = $region33
    $region32: #{dense.1} parent=1 // pred_region
      %165 = dma.done [#allocation4], 256
    $region33: #{dense.1} parent=1 // pred_fallthru
      _
    %166 = vsyncpa [#allocation3], 1
    %167 = vsyncpa [#allocation6], 1
    %168 = vsyncpa [#allocation4], 1

</llo_original>
